<compile_context>
chip_gen: v6e
topology: v6e:2x2x1
jax: 0.10.0
libtpu: 0.0.40
codegen_flags: <defaults>
</compile_context>

<pallas_src>
import functools
import math

import jax
import jax.numpy as jnp
from jax.experimental import pallas as pl
from jax.experimental.pallas import tpu as pltpu

EPS = 1e-5          # nn.BatchNorm1d default eps
_MIB = 1024 * 1024
_MAX_FOLD = 32      # cap on the row->lane fold factor (bounds finalize unrolling)


# ---------------------------------------------------------------------------
# Helpers
# ---------------------------------------------------------------------------
def _vmem_capacity_bytes():
    """Physical VMEM of the attached TPU (fallback: 64 MiB, the v7x minimum)."""
    try:
        info = pltpu.get_tpu_info()
        cap = getattr(info, "vmem_capacity_bytes", None)
        if cap:
            return int(cap)
    except Exception:
        pass
    return 64 * _MIB


def _lane_padded(d):
    return ((d + 127) // 128) * 128


# ---------------------------------------------------------------------------
# Kernels
# ---------------------------------------------------------------------------
def _small_batchnorm_kernel(x_ref, gamma_ref, beta_ref, o_ref):
    """Single-block BatchNorm1d forward (batch stats, biased variance)."""
    x = x_ref[...].astype(jnp.float32)
    g = gamma_ref[...]
    b = beta_ref[...]

    mean = jnp.mean(x, axis=0, keepdims=True)                       # (1, D)
    xc = x - mean
    var = jnp.mean(xc * xc, axis=0, keepdims=True)                  # biased
    inv_std = jax.lax.rsqrt(var + EPS)

    scale = g * inv_std
    shift = b - mean * scale
    o_ref[...] = (x * scale + shift).astype(o_ref.dtype)


def _stats_finalize_kernel(x_ref, gamma_ref, beta_ref, scale_ref, shift_ref,
                           *, tile_n, n_rows_folded, r, d, inv_n):
    """Pass 1: accumulate per-column sum / sum-of-squares across row tiles,
    then (fused, last grid step) fold lane groups and emit scale/shift."""
    i = pl.program_id(0)

    @pl.when(i == 0)
    def _():
        scale_ref[...] = jnp.zeros_like(scale_ref)   # column sums
        shift_ref[...] = jnp.zeros_like(shift_ref)   # column sums of squares

    x = x_ref[...].astype(jnp.float32)
    if n_rows_folded % tile_n != 0:
        # Mask out-of-bounds rows of the partial last tile (cheap (tile_n, 1)
        # iota broadcast in the select, not a full-tile iota).
        row = jax.lax.broadcasted_iota(jnp.int32, (tile_n, 1), 0) + i * tile_n
        x = jnp.where(row < n_rows_folded, x, 0.0)

    scale_ref[...] += jnp.sum(x, axis=0, keepdims=True)
    shift_ref[...] += jnp.sum(x * x, axis=0, keepdims=True)

    @pl.when(i == pl.num_programs(0) - 1)
    def _():
        col_sum = scale_ref[...]     # (1, d*r)
        col_sq = shift_ref[...]      # (1, d*r)
        # Reduce the r folded lane groups back to per-feature (1, d).
        s = col_sum[:, 0:d]
        q = col_sq[:, 0:d]
        for k in range(1, r):
            s = s + col_sum[:, k * d:(k + 1) * d]
            q = q + col_sq[:, k * d:(k + 1) * d]
        mean = s * inv_n
        var = jnp.maximum(q * inv_n - mean * mean, 0.0)   # biased, clamped
        inv_std = jax.lax.rsqrt(var + EPS)
        sc = gamma_ref[...] * inv_std
        sh = beta_ref[...] - mean * sc
        if r > 1:
            sc = jnp.concatenate([sc] * r, axis=1)        # tile back to (1, d*r)
            sh = jnp.concatenate([sh] * r, axis=1)
        scale_ref[...] = sc
        shift_ref[...] = sh


def _normalize_kernel(x_ref, scale_ref, shift_ref, o_ref):
    """Pass 2: y = x * scale + shift (affine folded into scale/shift)."""
    x = x_ref[...].astype(jnp.float32)
    o_ref[...] = (x * scale_ref[...] + shift_ref[...]).astype(o_ref.dtype)


# ---------------------------------------------------------------------------
# Wrapper
# ---------------------------------------------------------------------------
def normalization_forward(x, gamma, beta, *, max_tile_rows=None,
                          fast_path_bytes=None):
    """Equivalent of Normalization(embed_dim, 'batch', learn_norm=True).forward(x)."""
    orig_shape = x.shape
    D = orig_shape[-1]
    x2 = x.reshape(-1, D)
    N = x2.shape[0]
    itemsize = x2.dtype.itemsize

    gamma_2d = gamma.astype(jnp.float32).reshape(1, D)
    beta_2d = beta.astype(jnp.float32).reshape(1, D)

    vmem_cap = _vmem_capacity_bytes()
    usable_vmem = (vmem_cap * 3) // 4          # ~96 MiB v5e/v6e, ~48 MiB v7x

    # ---------------- fast path: one VMEM block (2x HBM traffic) -------------
    Dp = _lane_padded(D)
    x_bytes = N * D * itemsize
    # in + out (lane-padded) + f32 temporaries, with slack.
    fast_footprint = N * Dp * (2 * itemsize + 8)
    if fast_path_bytes is None:
        take_fast = fast_footprint <= usable_vmem
    else:
        take_fast = x_bytes <= fast_path_bytes
    if take_fast:
        out = pl.pallas_call(
            _small_batchnorm_kernel,
            out_shape=jax.ShapeDtypeStruct((N, D), x.dtype),
            grid=(1,),
            in_specs=[
                pl.BlockSpec((N, D), lambda i: (0, 0)),
                pl.BlockSpec((1, D), lambda i: (0, 0)),
                pl.BlockSpec((1, D), lambda i: (0, 0)),
            ],
            out_specs=pl.BlockSpec((N, D), lambda i: (0, 0)),
            compiler_params=pltpu.CompilerParams(
                dimension_semantics=("arbitrary",),
                vmem_limit_bytes=usable_vmem),
            cost_estimate=pl.CostEstimate(
                flops=8 * N * D, transcendentals=0,
                bytes_accessed=2 * x_bytes + 8 * D),
        )(x2, gamma_2d, beta_2d)
        return out.reshape(orig_shape)

    # ---------------- tiled two-pass path (3x HBM traffic) -------------------
    # Lane-dense folding: fold r rows into the lane axis so the last dim of
    # every DMA'd / stored tile is a multiple of 128 (unmasked stores).
    r = 1
    pad_rows = 0
    if D % 128 != 0:
        rc = 128 // math.gcd(D, 128)
        if rc <= _MAX_FOLD:
            r = rc
            pad_rows = (-N) % r

    if pad_rows:
        # TODO(synk): the pad + final slice cost one extra HBM round trip of x;
        # only taken for large activations with an awkward (D % 128 != 0,
        # N % fold != 0) shape.
        x_rows = jnp.pad(x2, ((0, pad_rows), (0, 0)))
    else:
        x_rows = x2
    NP = N + pad_rows
    NF, DF = NP // r, D * r
    xf = x_rows.reshape(NF, DF)

    # Row-tile size: >= 4 MiB per input tile (amortizes the ~0.35 us per-step
    # cost), bounded by the VMEM budget (pass 2 double-buffers in + out).
    DFp = _lane_padded(DF)
    row_bytes = DFp * itemsize
    tile_bytes_target = max(4 * _MIB, min(8 * _MIB, usable_vmem // 10))
    tile_n = max(8, tile_bytes_target // row_bytes)
    if max_tile_rows is not None:
        tile_n = min(tile_n, max_tile_rows)
    if tile_n >= NF:
        tile_n = NF                      # full extent: no alignment requirement
    else:
        tile_n = max(8, (tile_n // 8) * 8)
    grid_n = pl.cdiv(NF, tile_n)

    # Pass 1: column sum / sum-of-squares, finalize fused into the last step.
    stats_kernel = functools.partial(
        _stats_finalize_kernel, tile_n=tile_n, n_rows_folded=NF,
        r=r, d=D, inv_n=1.0 / N)
    scale_f, shift_f = pl.pallas_call(
        stats_kernel,
        out_shape=(jax.ShapeDtypeStruct((1, DF), jnp.float32),
                   jax.ShapeDtypeStruct((1, DF), jnp.float32)),
        grid=(grid_n,),
        in_specs=[
            pl.BlockSpec((tile_n, DF), lambda i: (i, 0)),
            pl.BlockSpec((1, D), lambda i: (0, 0)),
            pl.BlockSpec((1, D), lambda i: (0, 0)),
        ],
        out_specs=(pl.BlockSpec((1, DF), lambda i: (0, 0)),
                   pl.BlockSpec((1, DF), lambda i: (0, 0))),
        compiler_params=pltpu.CompilerParams(
            dimension_semantics=("arbitrary",),
            vmem_limit_bytes=usable_vmem),
        cost_estimate=pl.CostEstimate(
            flops=3 * NF * DF, transcendentals=0,
            bytes_accessed=NF * DF * itemsize + 8 * DF),
    )(xf, gamma_2d, beta_2d)

    # Pass 2: normalize ("parallel" -> megacore-sharded on v7x).
    out_f = pl.pallas_call(
        _normalize_kernel,
        out_shape=jax.ShapeDtypeStruct((NF, DF), x.dtype),
        grid=(grid_n,),
        in_specs=[
            pl.BlockSpec((tile_n, DF), lambda i: (i, 0)),
            pl.BlockSpec((1, DF), lambda i: (0, 0)),
            pl.BlockSpec((1, DF), lambda i: (0, 0)),
        ],
        out_specs=pl.BlockSpec((tile_n, DF), lambda i: (i, 0)),
        compiler_params=pltpu.CompilerParams(
            dimension_semantics=("parallel",),
            vmem_limit_bytes=usable_vmem),
        cost_estimate=pl.CostEstimate(
            flops=2 * NF * DF, transcendentals=0,
            bytes_accessed=2 * NF * DF * itemsize + 8 * DF),
    )(xf, scale_f, shift_f)

    out = out_f.reshape(NP, D)
    if pad_rows:
        out = out[:N]
    return out.reshape(orig_shape)


# ---------------------------------------------------------------------------
# Pure-JAX reference (nn.BatchNorm1d, track_running_stats=False semantics)
# ---------------------------------------------------------------------------
def _reference(x, gamma, beta):
    D = x.shape[-1]
    x2 = x.reshape(-1, D).astype(jnp.float32)
    mean = jnp.mean(x2, axis=0, keepdims=True)
    var = jnp.mean((x2 - mean) ** 2, axis=0, keepdims=True)
    y = (x2 - mean) / jnp.sqrt(var + EPS) * gamma + beta
    return y.reshape(x.shape).astype(x.dtype)


if __name__ == "__main__":
    key = jax.random.PRNGKey(0)
    kx, kg, kb, kx2, kx3, kx4, kg4, kb4 = jax.random.split(key, 8)

    D = 32
    gamma = 1.0 + 0.1 * jax.random.normal(kg, (D,), dtype=jnp.float32)
    beta = 0.1 * jax.random.normal(kb, (D,), dtype=jnp.float32)

    # Case 1: small (B, S, D) = (2, 8, 32) -> single-block fast path.
    x = jax.random.normal(kx, (2, 8, D), dtype=jnp.float32)
    out = jax.block_until_ready(normalization_forward(x, gamma, beta))
    ref = _reference(x, gamma, beta)
    assert out.shape == x.shape
    assert jnp.allclose(out, ref, atol=1e-4, rtol=1e-4), "fast path mismatch"

    # Case 2: tiled two-pass path with lane folding (D=32 -> fold 4 rows into
    # lanes, DF=128), multi-step grid and a masked partial last row tile.
    x2v = jax.random.normal(kx2, (2, 100, D), dtype=jnp.float32)
    out2 = jax.block_until_ready(
        normalization_forward(x2v, gamma, beta, fast_path_bytes=0, max_tile_rows=16))
    ref2 = _reference(x2v, gamma, beta)
    assert jnp.allclose(out2, ref2, atol=1e-4, rtol=1e-4), "tiled (folded) mismatch"

    # Case 3: tiled path where N is not divisible by the fold factor ->
    # rows are zero-padded to keep the lane-dense layout, then sliced off.
    x3v = jax.random.normal(kx3, (1, 13, D), dtype=jnp.float32)
    out3 = jax.block_until_ready(
        normalization_forward(x3v, gamma, beta, fast_path_bytes=0, max_tile_rows=8))
    ref3 = _reference(x3v, gamma, beta)
    assert jnp.allclose(out3, ref3, atol=1e-4, rtol=1e-4), "tiled (padded) mismatch"

    # Case 4: tiled path with D a multiple of 128 (no folding), multi-step grid.
    D4 = 128
    gamma4 = 1.0 + 0.1 * jax.random.normal(kg4, (D4,), dtype=jnp.float32)
    beta4 = 0.1 * jax.random.normal(kb4, (D4,), dtype=jnp.float32)
    x4v = jax.random.normal(kx4, (4, 64, D4), dtype=jnp.float32)
    out4 = jax.block_until_ready(
        normalization_forward(x4v, gamma4, beta4, fast_path_bytes=0, max_tile_rows=64))
    ref4 = _reference(x4v, gamma4, beta4)
    assert jnp.allclose(out4, ref4, atol=1e-4, rtol=1e-4), "tiled (D=128) mismatch"

    print("KERNEL_OK")
</pallas_src>

<mosaic_0001>
module attributes {stable_mosaic.version = 11 : i64} {
  func.func @_small_batchnorm_kernel(%arg0: i32, %arg1: memref<16x32xf32, #tpu.memory_space<vmem>>, %arg2: memref<1x32xf32, #tpu.memory_space<vmem>>, %arg3: memref<1x32xf32, #tpu.memory_space<vmem>>, %arg4: memref<16x32xf32, #tpu.memory_space<vmem>>) attributes {dimension_semantics = [#tpu.dimension_semantics<arbitrary>], iteration_bounds = array<i64: 1>, scalar_prefetch = 0 : i64, scratch_operands = 0 : i64, tpu.core_type = #tpu.core_type<tc>, window_params = [{pipeline_mode = #tpu.pipeline_mode<synchronous>, transform_indices = @transform_0, window_bounds = array<i64: 16, 32>}, {pipeline_mode = #tpu.pipeline_mode<synchronous>, transform_indices = @transform_1, window_bounds = array<i64: 1, 32>}, {pipeline_mode = #tpu.pipeline_mode<synchronous>, transform_indices = @transform_2, window_bounds = array<i64: 1, 32>}, {pipeline_mode = #tpu.pipeline_mode<synchronous>, transform_indices = @transform_3, window_bounds = array<i64: 16, 32>}]} {
    %c0 = arith.constant 0 : index
    %c0_0 = arith.constant 0 : index
    %0 = vector.load %arg1[%c0, %c0_0] : memref<16x32xf32, #tpu.memory_space<vmem>>, vector<16x32xf32>
    %c0_1 = arith.constant 0 : index
    %c0_2 = arith.constant 0 : index
    %1 = vector.load %arg2[%c0_1, %c0_2] : memref<1x32xf32, #tpu.memory_space<vmem>>, vector<1x32xf32>
    %c0_3 = arith.constant 0 : index
    %c0_4 = arith.constant 0 : index
    %2 = vector.load %arg3[%c0_3, %c0_4] : memref<1x32xf32, #tpu.memory_space<vmem>>, vector<1x32xf32>
    %cst = arith.constant dense<0.000000e+00> : vector<32xf32>
    %3 = vector.multi_reduction <add>, %0, %cst [0] : vector<16x32xf32> to vector<32xf32>
    %4 = vector.shape_cast %3 : vector<32xf32> to vector<1x32xf32>
    %cst_5 = arith.constant 1.600000e+01 : f32
    %5 = vector.broadcast %cst_5 : f32 to vector<1x32xf32>
    %6 = arith.divf %4, %5 : vector<1x32xf32>
    %7 = vector.broadcast %6 : vector<1x32xf32> to vector<16x32xf32>
    %8 = arith.subf %0, %7 : vector<16x32xf32>
    %9 = arith.mulf %8, %8 : vector<16x32xf32>
    %cst_6 = arith.constant dense<0.000000e+00> : vector<32xf32>
    %10 = vector.multi_reduction <add>, %9, %cst_6 [0] : vector<16x32xf32> to vector<32xf32>
    %11 = vector.shape_cast %10 : vector<32xf32> to vector<1x32xf32>
    %cst_7 = arith.constant 1.600000e+01 : f32
    %12 = vector.broadcast %cst_7 : f32 to vector<1x32xf32>
    %13 = arith.divf %11, %12 : vector<1x32xf32>
    %cst_8 = arith.constant 9.99999974E-6 : f32
    %14 = vector.broadcast %cst_8 : f32 to vector<1x32xf32>
    %15 = arith.addf %13, %14 : vector<1x32xf32>
    %16 = math.rsqrt %15 : vector<1x32xf32>
    %17 = arith.mulf %1, %16 : vector<1x32xf32>
    %18 = arith.mulf %6, %17 : vector<1x32xf32>
    %19 = arith.subf %2, %18 : vector<1x32xf32>
    %20 = vector.broadcast %17 : vector<1x32xf32> to vector<16x32xf32>
    %21 = arith.mulf %0, %20 : vector<16x32xf32>
    %22 = vector.broadcast %19 : vector<1x32xf32> to vector<16x32xf32>
    %23 = arith.addf %21, %22 : vector<16x32xf32>
    %c0_9 = arith.constant 0 : index
    %c0_10 = arith.constant 0 : index
    %24 = vector.load %arg4[%c0_9, %c0_10] : memref<16x32xf32, #tpu.memory_space<vmem>>, vector<16x32xf32>
    tpu.vector_store %arg4[%c0_9, %c0_10], %23 {strides = array<i32>} : memref<16x32xf32, #tpu.memory_space<vmem>>, vector<16x32xf32>,
    return
  }
  func.func @transform_0(%arg0: i32) -> (i32, i32) {
    %c0_i32 = arith.constant 0 : i32
    %c0_i32_0 = arith.constant 0 : i32
    %c0_i32_1 = arith.constant 0 : i32
    return %c0_i32, %c0_i32_0 : i32, i32
  }
  func.func @transform_1(%arg0: i32) -> (i32, i32) {
    %c0_i32 = arith.constant 0 : i32
    %c0_i32_0 = arith.constant 0 : i32
    %c0_i32_1 = arith.constant 0 : i32
    return %c0_i32, %c0_i32_0 : i32, i32
  }
  func.func @transform_2(%arg0: i32) -> (i32, i32) {
    %c0_i32 = arith.constant 0 : i32
    %c0_i32_0 = arith.constant 0 : i32
    %c0_i32_1 = arith.constant 0 : i32
    return %c0_i32, %c0_i32_0 : i32, i32
  }
  func.func @transform_3(%arg0: i32) -> (i32, i32) {
    %c0_i32 = arith.constant 0 : i32
    %c0_i32_0 = arith.constant 0 : i32
    %c0_i32_1 = arith.constant 0 : i32
    return %c0_i32, %c0_i32_0 : i32, i32
  }
}

</mosaic_0001>

<llo_original>
// kernel: tpu_custom_call.1
$region0: #{tpu_custom_call.1}
  #allocation0 [shape = 'u32[]', space=smem, size = 0x4, offset = 0x4, fixed_abs, tag = 'smem constant byte address 0x4 - core index']
  #allocation1 [shape = 'u32[144,128]{1,0:T(1,128)}', space=vmem, size = 0x12000, scoped, tag = 'internal scratch']
  %s0 = inlined_call_operand.hbm [shape: f32[16,32], index: 0, kind: input, shape index: {}]
  %s1 = inlined_call_operand.vmem [shape: f32[1,32], index: 1, kind: input, shape index: {}]
  %s2 = inlined_call_operand.vmem [shape: f32[1,32], index: 2, kind: input, shape index: {}]
  %s3 = inlined_call_operand.hbm [shape: f32[16,32], index: 3, kind: output, shape index: {}]
  %s4 = sld [smem:[#allocation0]]
  $region26: #{tpu_custom_call.1} parent=0
    _
  %s6 = ssub.s32 1, %s4
  %s7 = scalar_select 0, %s6, %s4
  $region1: #{tpu_custom_call.1} parent=0
    #allocation2 [shape = 'u8[8192]{0}', space=vmem, size = 0x2000, scoped, tag = 'input window, operand 0, single buffered']
    #allocation3 [shape = 's32[1]{0}', space=sflag, size = 0x4, scoped, tag = 'scoped memory for tpu_custom_call.1']
    #allocation4 [shape = 's32[1]{0}', space=sflag, size = 0x4, scoped, tag = 'scoped memory for tpu_custom_call.1']
    #allocation5 [shape = 'u8[8192]{0}', space=vmem, size = 0x2000, scoped, tag = 'output window, operand 0, single buffered']
    %8 = vsyncpa [#allocation3], 0
    %9 = vsyncpa [#allocation4], 0
    // Predicated region
    $region2: #{tpu_custom_call.1} parent=1 // pred_check
      _
    $region3: #{tpu_custom_call.1} parent=1 // pred_check_branch
      %11 = sbr.rel (0) target = $region5
    $region4: #{tpu_custom_call.1} parent=1 // pred_region
      %s13 = ssub.s32 256, 256
      %14 = vsyncadd [#allocation3], %s13
      %s15 = sshll.u32 [#allocation2], 4
      %s16 = int_to_ptr.vmem [resolvable:$true] %s15
      %21 = dma.hbm_to_vmem [thread:$0]  %s0, 256, %s16, [#allocation3], 128, 128, 8
    $region5: #{tpu_custom_call.1} parent=1 // pred_fallthru
      _
    // Predicated region
    $region6: #{tpu_custom_call.1} parent=1 // pred_check
      _
    $region7: #{tpu_custom_call.1} parent=1 // pred_check_branch
      %23 = sbr.rel (0) target = $region9
    $region8: #{tpu_custom_call.1} parent=1 // pred_region
      _
    $region9: #{tpu_custom_call.1} parent=1 // pred_fallthru
      _
    // Predicated region
    $region10: #{tpu_custom_call.1} parent=1 // pred_check
      _
    $region11: #{tpu_custom_call.1} parent=1 // pred_check_branch
      %25 = sbr.rel (0) target = $region13
    $region12: #{tpu_custom_call.1} parent=1 // pred_region
      _
    $region13: #{tpu_custom_call.1} parent=1 // pred_fallthru
      _
    // Predicated region
    $region14: #{tpu_custom_call.1} parent=1 // pred_check
      _
    $region15: #{tpu_custom_call.1} parent=1 // pred_check_branch
      %27 = sbr.rel (0) target = $region17
    $region16: #{tpu_custom_call.1} parent=1 // pred_region
      %28 = dma.done [#allocation3], 256
    $region17: #{tpu_custom_call.1} parent=1 // pred_fallthru
      _
    %v29 = vld [vmem:[#allocation2] sm:$0xff]
    %v30 = vld [vmem:[#allocation2 + $0x8] sm:$0xff]
    %v31 = vld [vmem:[%s1] sm:$0x1]
    %v32 = vld [vmem:[%s2] sm:$0x1]
    %vm33 = vcmask 261120
    %v34 = vsel %vm33, %v29, 0.0
    %v35 = vsel %vm33, %v30, 0.0
    %v36 = vadd.f32 %v34, %v35
    %v37 = vrot.slane %v36, 4
    %v38 = vadd.f32 %v36, %v37
    %v39 = vrot.slane %v38, 2
    %v40 = vadd.f32 %v38, %v39
    %v41 = vrot.slane %v40, 1
    %v42 = vadd.f32 %v40, %v41
    %v43 = vrcp.pop 16.0
    %v44 = vmul.f32 %v42, %v43
    %v45 = vsub.f32 %v29, %v44
    %v46 = vsub.f32 %v30, %v44
    %v47 = vmul.f32 %v45, %v45
    %v48 = vmul.f32 %v46, %v46
    %v49 = vsel %vm33, %v47, 0.0
    %v50 = vsel %vm33, %v48, 0.0
    %v51 = vadd.f32 %v49, %v50
    %v52 = vrot.slane %v51, 4
    %v53 = vadd.f32 %v51, %v52
    %v54 = vrot.slane %v53, 2
    %v55 = vadd.f32 %v53, %v54
    %v56 = vrot.slane %v55, 1
    %v57 = vadd.f32 %v55, %v56
    %v58 = vmul.f32 %v57, %v43
    %v59 = vadd.f32 %v58, 1e-05
    %v60 = vrsqrt.pop %v59
    %v61 = vmul.f32 %v31, %v60
    %v62 = vmul.f32 %v44, %v61
    %v63 = vsub.f32 %v32, %v62
    %v65 = vlaneseq
    %v66 = vshrl.u32 %v65, 7
    %v67 = vsub.s32 0, %v66
    %v68 = vrot.slane %v61, %v67
    %v70 = vmul.f32 %v29, %v68
    %v71 = vmul.f32 %v30, %v68
    %v73 = vlaneseq
    %v74 = vshrl.u32 %v73, 7
    %v75 = vsub.s32 0, %v74
    %v76 = vrot.slane %v63, %v75
    %v78 = vadd.f32 %v70, %v76
    %v79 = vadd.f32 %v71, %v76
    %80 = vst.msk [vmem:[#allocation5] sm:$0xff] %vm33, %v78
    %81 = vst.msk [vmem:[#allocation5 + $0x8] sm:$0xff] %vm33, %v79
    // Predicated region
    $region18: #{tpu_custom_call.1} parent=1 // pred_check
      _
    $region19: #{tpu_custom_call.1} parent=1 // pred_check_branch
      %83 = sbr.rel (0) target = $region21
    $region20: #{tpu_custom_call.1} parent=1 // pred_region
      %s85 = ssub.s32 256, 256
      %86 = vsyncadd [#allocation4], %s85
      %s87 = sshll.u32 [#allocation5], 4
      %s88 = int_to_ptr.vmem [resolvable:$true] %s87
      %93 = dma.vmem_to_hbm [thread:$0]  %s88, 256, %s3, [#allocation4], 128, 128, 8
    $region21: #{tpu_custom_call.1} parent=1 // pred_fallthru
      _
    // Predicated region
    $region22: #{tpu_custom_call.1} parent=1 // pred_check
      _
    $region23: #{tpu_custom_call.1} parent=1 // pred_check_branch
      %95 = sbr.rel (0) target = $region25
    $region24: #{tpu_custom_call.1} parent=1 // pred_region
      %96 = dma.done [#allocation4], 256
    $region25: #{tpu_custom_call.1} parent=1 // pred_fallthru
      _
    %97 = vsyncpa [#allocation3], 1
    %98 = vsyncpa [#allocation4], 1

</llo_original>
